<compile_context>
chip_gen: v5e
topology: v5e:2x2
jax: 0.10.0
libtpu: 0.0.40
codegen_flags: <defaults>
</compile_context>

<pallas_src>
import jax
import jax.numpy as jnp
from jax.experimental import pallas as pl
from jax.experimental.pallas import tpu as pltpu


def _round_up(x, m):
    return (x + m - 1) // m * m


def _ffn_kernel(x_ref, w1_ref, b1_ref, w2_ref, b2_ref, o_ref):
    # x_ref:  (tm, D)   bf16 row-tile of tokens (resident across the h axis)
    # w1_ref: (D, th)   bf16 column-chunk of first-layer weight
    # b1_ref: (1, th)   f32
    # w2_ref: (th, D)   bf16 row-chunk of second-layer weight
    # b2_ref: (1, D)    f32
    # o_ref:  (tm, D)   f32 output row-tile; doubles as the accumulator since
    #                   its block index is constant across the h (reduction) axis.
    hi = pl.program_id(1)

    @pl.when(hi == 0)
    def _():
        o_ref[...] = jnp.zeros_like(o_ref)

    # First matmul chunk: bf16 operands, f32 accumulation; bias + ReLU in f32.
    h = jnp.dot(x_ref[...], w1_ref[...], preferred_element_type=jnp.float32)
    h = jnp.maximum(h + b1_ref[...], 0.0)

    # Second matmul chunk, accumulated directly into the resident output tile.
    o_ref[...] += jnp.dot(
        h.astype(w2_ref.dtype), w2_ref[...], preferred_element_type=jnp.float32
    )

    @pl.when(hi == pl.num_programs(1) - 1)
    def _():
        o_ref[...] = o_ref[...] + b2_ref[...]


def _vmem_capacity_bytes():
    """Best-effort physical VMEM query; conservative (v7x) default on failure."""
    try:
        info = pltpu.get_tpu_info()
        for attr in ("vmem_capacity_bytes", "vmem_bytes", "vmem_size_bytes"):
            v = getattr(info, attr, None)
            if v:
                return int(v)
    except Exception:
        pass
    return 64 << 20


def _generation_plan():
    cap = _vmem_capacity_bytes()
    if cap >= (128 << 20):
        # v5e / v6e: 128 MiB VMEM, single TensorCore.  Large row tiles push the
        # kernel to the MXU roofline (v6e ridge ~680 flops/byte of weights).
        return dict(vmem_budget=100 << 20, vmem_limit_cap=112 << 20,
                    tm_default=768, row_align=256, th_default=512)
    # v7x: 64 MiB VMEM per TensorCore, 2 TCs, ~3.2 TB/s HBM (ridge ~310).
    return dict(vmem_budget=48 << 20, vmem_limit_cap=56 << 20,
                tm_default=512, row_align=256, th_default=512)


def _tile_bytes(tm, th, D):
    """Conservative VMEM footprint of one tile set (double-buffered blocks)."""
    x_t = 2 * tm * D * 2            # x tile, bf16, double-buffered
    o_t = 2 * tm * D * 4            # out tile, f32, double-buffered
    w_t = 2 * 2 * D * th * 2        # W1 + W2 chunks, bf16, double-buffered
    b_t = 2 * (th + D) * 4          # bias chunks, f32, double-buffered
    hid = tm * th * (4 + 2)         # f32 hidden temp + bf16 cast copy
    return x_t + o_t + w_t + b_t + hid


def _choose_th(H, th_cap):
    """Largest divisor of H that is a multiple of 128 and <= th_cap."""
    best = 0
    d = 128
    lim = min(H, th_cap)
    while d <= lim:
        if H % d == 0:
            best = d
        d += 128
    return best if best else H


def feed_forward(x, w1, b1, w2, b2, *, tm=None, th=None):
    """x: (B, T, D) float32.  w1: (D, H), w2: (H, D).  Returns (B, T, D)."""
    B, T, D = x.shape
    H = w1.shape[1]
    M = B * T

    plan = _generation_plan()
    budget = plan["vmem_budget"]
    row_align = plan["row_align"]
    tm_default = tm if tm is not None else plan["tm_default"]
    th_cap = th if th is not None else plan["th_default"]

    # --- Pad hidden dim to a multiple of 128 (zero weights/bias contribute 0).
    H_pad = _round_up(H, 128)
    if H_pad != H:
        w1 = jnp.pad(w1, ((0, 0), (0, H_pad - H)))
        b1 = jnp.pad(b1, ((0, H_pad - H),))
        w2 = jnp.pad(w2, ((0, H_pad - H), (0, 0)))

    # --- Row tile: multiple of 16 (bf16 sublane packing); MXU-height aligned
    # (row_align) once the problem is big enough.
    if M <= row_align:
        tm_eff = max(16, _round_up(M, 16))
    else:
        tm_eff = min(_round_up(tm_default, row_align), _round_up(M, row_align))

    # --- Hidden chunk: weight-resident fast path if everything fits VMEM,
    # otherwise stream H in 128-aligned chunks and shrink until it fits.
    if _tile_bytes(tm_eff, H_pad, D) <= budget:
        th_eff = H_pad
        weights_resident = True
    else:
        weights_resident = False
        th_eff = _choose_th(H_pad, th_cap)
        while th_eff > 128 and _tile_bytes(tm_eff, th_eff, D) > budget:
            th_eff = _choose_th(H_pad, th_eff // 2)
        while tm_eff > 16 and _tile_bytes(tm_eff, th_eff, D) > budget:
            tm_eff = max(16, _round_up(tm_eff // 2, 16))

    # --- v7x megacore: when weights are resident (no extra streaming cost),
    # prefer >= 2 row tiles so both TensorCores get work on the parallel axis.
    if weights_resident and M > row_align and (M + tm_eff - 1) // tm_eff < 2:
        tm_eff = max(row_align, _round_up((M + 1) // 2, row_align))

    M_pad = _round_up(M, tm_eff)
    num_m = M_pad // tm_eff
    num_h = H_pad // th_eff

    # --- Flatten tokens, pad row count to a multiple of the row tile.
    x2 = x.reshape(M, D)
    if M_pad != M:
        x2 = jnp.pad(x2, ((0, M_pad - M), (0, 0)))

    # bf16 MXU operands; biases stay f32 (epilogue math is f32 on the VPU).
    xb = x2.astype(jnp.bfloat16)
    w1b = w1.astype(jnp.bfloat16)
    w2b = w2.astype(jnp.bfloat16)
    b1_2 = b1.reshape(1, H_pad).astype(jnp.float32)
    b2_2 = b2.reshape(1, D).astype(jnp.float32)

    vmem_limit = min(
        max(int(_tile_bytes(tm_eff, th_eff, D) * 1.25) + (4 << 20), 32 << 20),
        plan["vmem_limit_cap"],
    )

    # Truthful cost estimate: weights are re-streamed num_m times unless resident.
    flops = 4 * M_pad * D * H_pad
    weight_bytes = 2 * D * H_pad * 2
    weight_passes = 1 if weights_resident else num_m
    bytes_accessed = (
        M_pad * D * 2                      # x read (bf16)
        + M_pad * D * 4                    # out write (f32)
        + weight_bytes * weight_passes     # W1 + W2 (bf16) per pass
        + (H_pad + D) * 4                  # biases (f32)
    )

    out2 = pl.pallas_call(
        _ffn_kernel,
        out_shape=jax.ShapeDtypeStruct((M_pad, D), jnp.float32),
        grid=(num_m, num_h),
        in_specs=[
            pl.BlockSpec((tm_eff, D), lambda i, h: (i, 0)),   # x row-tile
            pl.BlockSpec((D, th_eff), lambda i, h: (0, h)),   # W1 column-chunk
            pl.BlockSpec((1, th_eff), lambda i, h: (0, h)),   # b1 chunk
            pl.BlockSpec((th_eff, D), lambda i, h: (h, 0)),   # W2 row-chunk
            pl.BlockSpec((1, D), lambda i, h: (0, 0)),        # b2
        ],
        out_specs=pl.BlockSpec((tm_eff, D), lambda i, h: (i, 0)),
        compiler_params=pltpu.CompilerParams(
            dimension_semantics=("parallel", "arbitrary"),
            vmem_limit_bytes=vmem_limit,
        ),
        cost_estimate=pl.CostEstimate(
            flops=int(flops),
            transcendentals=0,
            bytes_accessed=int(bytes_accessed),
        ),
    )(xb, w1b, b1_2, w2b, b2_2)

    return out2[:M].reshape(B, T, D).astype(x.dtype)


def init_params(key, n_embed):
    """Deterministic init mimicking torch.nn.Linear defaults
    (uniform(-1/sqrt(fan_in), 1/sqrt(fan_in)))."""
    hidden = 4 * n_embed
    k1, k2, k3, k4 = jax.random.split(key, 4)
    bound1 = 1.0 / jnp.sqrt(jnp.float32(n_embed))
    bound2 = 1.0 / jnp.sqrt(jnp.float32(hidden))
    # Stored as (in, out) == torch weight transposed.
    w1 = jax.random.uniform(k1, (n_embed, hidden), jnp.float32, -bound1, bound1)
    b1 = jax.random.uniform(k2, (hidden,), jnp.float32, -bound1, bound1)
    w2 = jax.random.uniform(k3, (hidden, n_embed), jnp.float32, -bound2, bound2)
    b2 = jax.random.uniform(k4, (n_embed,), jnp.float32, -bound2, bound2)
    return w1, b1, w2, b2


if __name__ == "__main__":
    key = jax.random.PRNGKey(0)
    kx, kp = jax.random.split(key)

    batch, seq, n_embed = 2, 8, 32
    x = jax.random.normal(kx, (batch, seq, n_embed), jnp.float32)
    w1, b1, w2, b2 = init_params(kp, n_embed)

    out = feed_forward(x, w1, b1, w2, b2)
    out = jax.block_until_ready(out)

    # Reference check in plain JAX (f32 path; kernel uses bf16 matmul operands
    # with f32 accumulation, so compare with a loosened tolerance).
    ref = jnp.maximum(x.reshape(-1, n_embed) @ w1 + b1, 0.0) @ w2 + b2
    ref = ref.reshape(batch, seq, n_embed)
    assert out.shape == (batch, seq, n_embed)
    assert jnp.allclose(out, ref, atol=5e-2, rtol=5e-2)

    print("KERNEL_OK")
</pallas_src>

<mosaic_0001>
module attributes {stable_mosaic.version = 11 : i64} {
  func.func @_ffn_kernel(%arg0: i32, %arg1: i32, %arg2: memref<16x32xbf16, #tpu.memory_space<vmem>>, %arg3: memref<32x128xbf16, #tpu.memory_space<vmem>>, %arg4: memref<1x128xf32, #tpu.memory_space<vmem>>, %arg5: memref<128x32xbf16, #tpu.memory_space<vmem>>, %arg6: memref<1x32xf32, #tpu.memory_space<vmem>>, %arg7: memref<16x32xf32, #tpu.memory_space<vmem>>) attributes {dimension_semantics = [#tpu.dimension_semantics<parallel>, #tpu.dimension_semantics<arbitrary>], iteration_bounds = array<i64: 1, 1>, scalar_prefetch = 0 : i64, scratch_operands = 0 : i64, tpu.core_type = #tpu.core_type<tc>, window_params = [{transform_indices = @transform_0, window_bounds = array<i64: 16, 32>}, {transform_indices = @transform_1, window_bounds = array<i64: 32, 128>}, {transform_indices = @transform_2, window_bounds = array<i64: 1, 128>}, {transform_indices = @transform_3, window_bounds = array<i64: 128, 32>}, {pipeline_mode = #tpu.pipeline_mode<synchronous>, transform_indices = @transform_4, window_bounds = array<i64: 1, 32>}, {transform_indices = @transform_5, window_bounds = array<i64: 16, 32>}]} {
    %c0_i32 = arith.constant 0 : i32
    %0 = arith.cmpi eq, %arg1, %c0_i32 : i32
    %1 = arith.extui %0 : i1 to i32
    %c0_i32_0 = arith.constant 0 : i32
    %2 = arith.cmpi ne, %1, %c0_i32_0 : i32
    scf.if %2 {
      %cst_16 = arith.constant 0.000000e+00 : f32
      %20 = vector.broadcast %cst_16 : f32 to vector<16x32xf32>
      %c0_17 = arith.constant 0 : index
      %c0_18 = arith.constant 0 : index
      %21 = vector.load %arg7[%c0_17, %c0_18] : memref<16x32xf32, #tpu.memory_space<vmem>>, vector<16x32xf32>
      tpu.vector_store %arg7[%c0_17, %c0_18], %20 {strides = array<i32>} : memref<16x32xf32, #tpu.memory_space<vmem>>, vector<16x32xf32>,
    } else {
    }
    %c0 = arith.constant 0 : index
    %c0_1 = arith.constant 0 : index
    %3 = vector.load %arg2[%c0, %c0_1] : memref<16x32xbf16, #tpu.memory_space<vmem>>, vector<16x32xbf16>
    %c0_2 = arith.constant 0 : index
    %c0_3 = arith.constant 0 : index
    %4 = vector.load %arg3[%c0_2, %c0_3] : memref<32x128xbf16, #tpu.memory_space<vmem>>, vector<32x128xbf16>
    %cst = arith.constant dense<0.000000e+00> : vector<16x128xf32>
    %5 = tpu.matmul %3, %4, %cst {dimension_numbers = #tpu.dot_dimension_numbers<[1], [0], [0], [1], [0, 0, 1, 1], [], []>} : vector<16x32xbf16>, vector<32x128xbf16>, vector<16x128xf32> -> vector<16x128xf32>
    %c0_4 = arith.constant 0 : index
    %c0_5 = arith.constant 0 : index
    %6 = vector.load %arg4[%c0_4, %c0_5] : memref<1x128xf32, #tpu.memory_space<vmem>>, vector<1x128xf32>
    %7 = vector.broadcast %6 : vector<1x128xf32> to vector<16x128xf32>
    %8 = arith.addf %5, %7 : vector<16x128xf32>
    %cst_6 = arith.constant 0.000000e+00 : f32
    %9 = vector.broadcast %cst_6 : f32 to vector<16x128xf32>
    %10 = arith.maximumf %8, %9 : vector<16x128xf32>
    %c0_7 = arith.constant 0 : index
    %c0_8 = arith.constant 0 : index
    %11 = vector.load %arg7[%c0_7, %c0_8] : memref<16x32xf32, #tpu.memory_space<vmem>>, vector<16x32xf32>
    %12 = arith.truncf %10 : vector<16x128xf32> to vector<16x128xbf16>
    %c0_9 = arith.constant 0 : index
    %c0_10 = arith.constant 0 : index
    %13 = vector.load %arg5[%c0_9, %c0_10] : memref<128x32xbf16, #tpu.memory_space<vmem>>, vector<128x32xbf16>
    %cst_11 = arith.constant dense<0.000000e+00> : vector<16x32xf32>
    %14 = tpu.matmul %12, %13, %cst_11 {dimension_numbers = #tpu.dot_dimension_numbers<[1], [0], [0], [1], [0, 0, 1, 1], [], []>} : vector<16x128xbf16>, vector<128x32xbf16>, vector<16x32xf32> -> vector<16x32xf32>
    %15 = arith.addf %11, %14 : vector<16x32xf32>
    %c0_12 = arith.constant 0 : index
    %c0_13 = arith.constant 0 : index
    %16 = vector.load %arg7[%c0_12, %c0_13] : memref<16x32xf32, #tpu.memory_space<vmem>>, vector<16x32xf32>
    tpu.vector_store %arg7[%c0_12, %c0_13], %15 {strides = array<i32>} : memref<16x32xf32, #tpu.memory_space<vmem>>, vector<16x32xf32>,
    %c0_i32_14 = arith.constant 0 : i32
    %17 = arith.cmpi eq, %arg1, %c0_i32_14 : i32
    %18 = arith.extui %17 : i1 to i32
    %c0_i32_15 = arith.constant 0 : i32
    %19 = arith.cmpi ne, %18, %c0_i32_15 : i32
    scf.if %19 {
      %c0_16 = arith.constant 0 : index
      %c0_17 = arith.constant 0 : index
      %20 = vector.load %arg7[%c0_16, %c0_17] : memref<16x32xf32, #tpu.memory_space<vmem>>, vector<16x32xf32>
      %c0_18 = arith.constant 0 : index
      %c0_19 = arith.constant 0 : index
      %21 = vector.load %arg6[%c0_18, %c0_19] : memref<1x32xf32, #tpu.memory_space<vmem>>, vector<1x32xf32>
      %22 = vector.broadcast %21 : vector<1x32xf32> to vector<16x32xf32>
      %23 = arith.addf %20, %22 : vector<16x32xf32>
      %c0_20 = arith.constant 0 : index
      %c0_21 = arith.constant 0 : index
      %24 = vector.load %arg7[%c0_20, %c0_21] : memref<16x32xf32, #tpu.memory_space<vmem>>, vector<16x32xf32>
      tpu.vector_store %arg7[%c0_20, %c0_21], %23 {strides = array<i32>} : memref<16x32xf32, #tpu.memory_space<vmem>>, vector<16x32xf32>,
    } else {
    }
    return
  }
  func.func @transform_0(%arg0: i32, %arg1: i32) -> (i32, i32) {
    %c0_i32 = arith.constant 0 : i32
    %c0_i32_0 = arith.constant 0 : i32
    return %arg0, %c0_i32 : i32, i32
  }
  func.func @transform_1(%arg0: i32, %arg1: i32) -> (i32, i32) {
    %c0_i32 = arith.constant 0 : i32
    %c0_i32_0 = arith.constant 0 : i32
    return %c0_i32, %arg1 : i32, i32
  }
  func.func @transform_2(%arg0: i32, %arg1: i32) -> (i32, i32) {
    %c0_i32 = arith.constant 0 : i32
    %c0_i32_0 = arith.constant 0 : i32
    return %c0_i32, %arg1 : i32, i32
  }
  func.func @transform_3(%arg0: i32, %arg1: i32) -> (i32, i32) {
    %c0_i32 = arith.constant 0 : i32
    %c0_i32_0 = arith.constant 0 : i32
    return %arg1, %c0_i32 : i32, i32
  }
  func.func @transform_4(%arg0: i32, %arg1: i32) -> (i32, i32) {
    %c0_i32 = arith.constant 0 : i32
    %c0_i32_0 = arith.constant 0 : i32
    %c0_i32_1 = arith.constant 0 : i32
    return %c0_i32, %c0_i32_0 : i32, i32
  }
  func.func @transform_5(%arg0: i32, %arg1: i32) -> (i32, i32) {
    %c0_i32 = arith.constant 0 : i32
    %c0_i32_0 = arith.constant 0 : i32
    return %arg0, %c0_i32 : i32, i32
  }
}

</mosaic_0001>

<llo_original>
// kernel: tpu_custom_call.1
$region0: #{tpu_custom_call.1}
  #allocation0 [shape = 'u32[]', space=smem, size = 0x4, offset = 0x4, fixed_abs, tag = 'smem constant byte address 0x4 - core index']
  #allocation1 [shape = 'u32[72,128]{1,0:T(1,128)}', space=vmem, size = 0x9000, scoped, tag = 'internal scratch']
  %s0 = inlined_call_operand.vmem [shape: bf16[16,32], index: 0, kind: input, shape index: {}]
  %s1 = inlined_call_operand.vmem [shape: bf16[32,128], index: 1, kind: input, shape index: {}]
  %s2 = inlined_call_operand.vmem [shape: f32[1,128], index: 2, kind: input, shape index: {}]
  %s3 = inlined_call_operand.vmem [shape: bf16[128,32], index: 3, kind: input, shape index: {}]
  %s4 = inlined_call_operand.vmem [shape: f32[1,32], index: 4, kind: input, shape index: {}]
  %s5 = inlined_call_operand.hbm [shape: f32[16,32], index: 5, kind: output, shape index: {}]
  %s6 = sld [smem:[#allocation0]]
  $region38: #{tpu_custom_call.1} parent=0
    _
  %s8 = ssub.s32 1, %s6
  %s9 = scalar_select 0, %s8, %s6
  $region1: #{tpu_custom_call.1} parent=0
    #allocation2 [shape = 'u8[8192]{0}', space=vmem, size = 0x2000, scoped, tag = 'output window, operand 0, single buffered']
    #allocation3 [shape = 's32[1]{0}', space=sflag, size = 0x4, scoped, tag = 'scoped memory for tpu_custom_call.1']
    %10 = vsyncpa [#allocation3], 0
    // Predicated region
    $region2: #{tpu_custom_call.1} parent=1 // pred_check
      _
    $region3: #{tpu_custom_call.1} parent=1 // pred_check_branch
      %12 = sbr.rel (0) target = $region5
    $region4: #{tpu_custom_call.1} parent=1 // pred_region
      _
    $region5: #{tpu_custom_call.1} parent=1 // pred_fallthru
      _
    // Predicated region
    $region6: #{tpu_custom_call.1} parent=1 // pred_check
      _
    $region7: #{tpu_custom_call.1} parent=1 // pred_check_branch
      %14 = sbr.rel (0) target = $region9
    $region8: #{tpu_custom_call.1} parent=1 // pred_region
      _
    $region9: #{tpu_custom_call.1} parent=1 // pred_fallthru
      _
    // Predicated region
    $region10: #{tpu_custom_call.1} parent=1 // pred_check
      _
    $region11: #{tpu_custom_call.1} parent=1 // pred_check_branch
      %16 = sbr.rel (0) target = $region13
    $region12: #{tpu_custom_call.1} parent=1 // pred_region
      _
    $region13: #{tpu_custom_call.1} parent=1 // pred_fallthru
      _
    // Predicated region
    $region14: #{tpu_custom_call.1} parent=1 // pred_check
      _
    $region15: #{tpu_custom_call.1} parent=1 // pred_check_branch
      %18 = sbr.rel (0) target = $region17
    $region16: #{tpu_custom_call.1} parent=1 // pred_region
      _
    $region17: #{tpu_custom_call.1} parent=1 // pred_fallthru
      _
    // Predicated region
    $region18: #{tpu_custom_call.1} parent=1 // pred_check
      _
    $region19: #{tpu_custom_call.1} parent=1 // pred_check_branch
      %20 = sbr.rel (0) target = $region21
    $region20: #{tpu_custom_call.1} parent=1 // pred_region
      _
    $region21: #{tpu_custom_call.1} parent=1 // pred_fallthru
      _
    %p22 = scmp.eq.s32.totalorder 0, 0
    // Predicated region
    $region22: #{tpu_custom_call.1} parent=1 // pred_check
      %p23 = pneg %p22
    $region23: #{tpu_custom_call.1} parent=1 // pred_check_branch
      %25 = sbr.rel (%p23) target = $region25
    $region24: #{tpu_custom_call.1} parent=1 // pred_region
      %vm26 = vcmask 261120
      %27 = vst.msk [vmem:[#allocation2] sm:$0xff] %vm26, 0.0
      %28 = vst.msk [vmem:[#allocation2 + $0x8] sm:$0xff] %vm26, 0.0
    $region25: #{tpu_custom_call.1} parent=1 // pred_fallthru
      _
    %v29 = vld [vmem:[%s0] sm:$0xf]
    %v30 = vld [vmem:[%s0 + $0x4] sm:$0xf]
    %v31 = vld [vmem:[%s1] sm:$0xf]
    %v32 = vld [vmem:[%s1 + $0x4] sm:$0xf]
    %v33 = vld [vmem:[%s1 + $0x8] sm:$0xf]
    %v34 = vld [vmem:[%s1 + $0xc] sm:$0xf]
    %v35 = vld [vmem:[%s2] sm:$0x1]
    %v37 = vperm.slane %v35, 0
    %v41 = vunpack.c.l.b16 %v29
    %v42 = vunpack.c.l.b16 %v30
    %v43 = vpack.c.b16 %v42, %v41
    %v48 = vunpack.c.l.b16 %v31
    %v49 = vunpack.c.l.b16 %v32
    %v50 = vunpack.c.l.b16 %v33
    %v51 = vunpack.c.l.b16 %v34
    %v52 = vpack.c.b16 %v49, %v48
    %v53 = vpack.c.b16 %v51, %v50
    %vm56 = vcmask 261120
    %v58 = vsel %vm56, %v43, 0
    %60 = vmatpush.bf16.msra.mxu0 0
    %61 = vmatpush.bf16.msra.mxu0 0
    %62 = vmatpush.bf16.msra.mxu0 0
    %63 = vmatpush.bf16.msra.mxu0 0
    %64 = vmatpush.bf16.msra.mxu0 0
    %65 = vmatpush.bf16.msra.mxu0 0
    %66 = vmatpush.bf16.msra.mxu0 %v53
    %67 = vmatpush.bf16.msra.mxu0 %v52
    %68 = vmatmul.bf16.gmra.mxu0 %v58
    %v69 = vpop.f32.mrf.mxu0
    %v70 = vadd.f32 %v37, %v69
    %v71 = vpop.f32.mrf.mxu0
    %v72 = vadd.f32 %v37, %v71
    %73 = vdwg.mxu0
    %v74 = vmax.f32 %v70, 0.0
    %v75 = vmax.f32 %v72, 0.0
    %v76 = vld [vmem:[#allocation2] sm:$0xff]
    %v77 = vld [vmem:[#allocation2 + $0x8] sm:$0xff]
    %v78 = vpack.c.bf16 %v75, %v74
    %v79 = vld [vmem:[%s3] sm:$0xf]
    %v80 = vld [vmem:[%s3 + $0x4] sm:$0xf]
    %v81 = vld [vmem:[%s3 + $0x8] sm:$0xf]
    %v82 = vld [vmem:[%s3 + $0xc] sm:$0xf]
    %v83 = vld [vmem:[%s3 + $0x10] sm:$0xf]
    %v84 = vld [vmem:[%s3 + $0x14] sm:$0xf]
    %v85 = vld [vmem:[%s3 + $0x18] sm:$0xf]
    %v86 = vld [vmem:[%s3 + $0x1c] sm:$0xf]
    %v87 = vld [vmem:[%s3 + $0x20] sm:$0xf]
    %v88 = vld [vmem:[%s3 + $0x24] sm:$0xf]
    %v89 = vld [vmem:[%s3 + $0x28] sm:$0xf]
    %v90 = vld [vmem:[%s3 + $0x2c] sm:$0xf]
    %v91 = vld [vmem:[%s3 + $0x30] sm:$0xf]
    %v92 = vld [vmem:[%s3 + $0x34] sm:$0xf]
    %v93 = vld [vmem:[%s3 + $0x38] sm:$0xf]
    %v94 = vld [vmem:[%s3 + $0x3c] sm:$0xf]
    %v111 = vunpack.c.l.b16 %v79
    %v112 = vunpack.c.l.b16 %v80
    %v113 = vunpack.c.l.b16 %v81
    %v114 = vunpack.c.l.b16 %v82
    %v115 = vunpack.c.l.b16 %v83
    %v116 = vunpack.c.l.b16 %v84
    %v117 = vunpack.c.l.b16 %v85
    %v118 = vunpack.c.l.b16 %v86
    %v119 = vunpack.c.l.b16 %v87
    %v120 = vunpack.c.l.b16 %v88
    %v121 = vunpack.c.l.b16 %v89
    %v122 = vunpack.c.l.b16 %v90
    %v123 = vunpack.c.l.b16 %v91
    %v124 = vunpack.c.l.b16 %v92
    %v125 = vunpack.c.l.b16 %v93
    %v126 = vunpack.c.l.b16 %v94
    %v127 = vpack.c.b16 %v112, %v111
    %v128 = vpack.c.b16 %v114, %v113
    %v129 = vpack.c.b16 %v116, %v115
    %v130 = vpack.c.b16 %v118, %v117
    %v131 = vpack.c.b16 %v120, %v119
    %v132 = vpack.c.b16 %v122, %v121
    %v133 = vpack.c.b16 %v124, %v123
    %v134 = vpack.c.b16 %v126, %v125
    %143 = vmatpush.bf16.msra.mxu0 %v134
    %144 = vmatpush.bf16.msra.mxu0 %v133
    %145 = vmatpush.bf16.msra.mxu0 %v132
    %146 = vmatpush.bf16.msra.mxu0 %v131
    %147 = vmatpush.bf16.msra.mxu0 %v130
    %148 = vmatpush.bf16.msra.mxu0 %v129
    %149 = vmatpush.bf16.msra.mxu0 %v128
    %150 = vmatpush.bf16.msra.mxu0 %v127
    %151 = vmatmul.bf16.gmra.mxu0 %v78
    %v152 = vpop.f32.mrf.mxu0
    %v153 = vadd.f32 0.0, %v152
    %v154 = vpop.f32.mrf.mxu0
    %v155 = vadd.f32 0.0, %v154
    %156 = vdwg.mxu0
    %v157 = vadd.f32 %v76, %v153
    %v158 = vadd.f32 %v77, %v155
    %159 = vst.msk [vmem:[#allocation2] sm:$0xff] %vm56, %v157
    %160 = vst.msk [vmem:[#allocation2 + $0x8] sm:$0xff] %vm56, %v158
    // Predicated region
    $region26: #{tpu_custom_call.1} parent=1 // pred_check
      %p161 = pneg %p22
    $region27: #{tpu_custom_call.1} parent=1 // pred_check_branch
      %163 = sbr.rel (%p161) target = $region29
    $region28: #{tpu_custom_call.1} parent=1 // pred_region
      %v164 = vld [vmem:[#allocation2] sm:$0xff]
      %v165 = vld [vmem:[#allocation2 + $0x8] sm:$0xff]
      %v166 = vld [vmem:[%s4] sm:$0x1]
      %v168 = vperm.slane %v166, 0
      %v170 = vadd.f32 %v164, %v168
      %v171 = vadd.f32 %v165, %v168
      %172 = vst.msk [vmem:[#allocation2] sm:$0xff] %vm56, %v170
      %173 = vst.msk [vmem:[#allocation2 + $0x8] sm:$0xff] %vm56, %v171
    $region29: #{tpu_custom_call.1} parent=1 // pred_fallthru
      _
    // Predicated region
    $region30: #{tpu_custom_call.1} parent=1 // pred_check
      _
    $region31: #{tpu_custom_call.1} parent=1 // pred_check_branch
      %175 = sbr.rel (0) target = $region33
    $region32: #{tpu_custom_call.1} parent=1 // pred_region
      %177 = vsyncadd [#allocation3], 0
      %s178 = sshll.u32 [#allocation2], 4
      %s179 = int_to_ptr.vmem [resolvable:$true] %s178
      %s180 = sshll.u32 %s5, 4
      %s181 = int_to_ptr.hbm [resolvable:$true] %s180
      %186 = dma.vmem_to_hbm [thread:$0]  %s179, 256, %s181, [#allocation3], 128, 128, 8
    $region33: #{tpu_custom_call.1} parent=1 // pred_fallthru
      _
    // Predicated region
    $region34: #{tpu_custom_call.1} parent=1 // pred_check
      _
    $region35: #{tpu_custom_call.1} parent=1 // pred_check_branch
      %188 = sbr.rel (0) target = $region37
    $region36: #{tpu_custom_call.1} parent=1 // pred_region
      %190 = dma.done [#allocation3], 256
    $region37: #{tpu_custom_call.1} parent=1 // pred_fallthru
      _
    %191 = vsyncpa [#allocation3], 1

</llo_original>
